<compile_context>
chip_gen: v6e
topology: v6e:2x2x1
jax: 0.10.0
libtpu: 0.0.40
codegen_flags: <defaults>
</compile_context>

<pallas_src>
import math

import jax
import jax.numpy as jnp
from jax.experimental import pallas as pl
from jax.experimental.pallas import tpu as pltpu


def _copy_kernel(x_ref, o_ref):
    # Pure vld -> vst copy of a (tile_rows, embed_dim) slab.  No reshape in
    # kernel: keeps the store lane-dense and avoids XLU relayouts.
    o_ref[...] = x_ref[...]


def _vmem_capacity_bytes() -> int:
    # Query physical VMEM; fall back to the smallest current generation
    # (v7x: 64 MiB per TensorCore) so sizing stays safe everywhere.
    try:
        return int(pltpu.get_tpu_info().vmem_capacity_bytes)
    except Exception:
        return 64 * 1024 * 1024


def _pick_tile_rows(total_rows: int, embed_dim: int, itemsize: int,
                    vmem_bytes: int) -> int:
    """Largest row tile such that in+out, double-buffered, fit in ~half VMEM."""
    row_bytes = embed_dim * itemsize
    budget = vmem_bytes // 2          # half the physical VMEM for the pipeline
    max_tile_bytes = max(row_bytes, budget // 4)  # 2 inputs bufs + 2 output bufs
    rows = max(8, max_tile_bytes // row_bytes)
    rows = min(rows, 2048)            # diminishing returns past ~2048 rows
    rows = max(8, (rows // 8) * 8)    # sublane multiple
    if total_rows <= rows:
        return total_rows             # single full-extent block
    return rows


def token2channel(x: jax.Array) -> jax.Array:
    """Pallas implementation of Token2Channel.forward.

    x: (bs, c, embed_dim) -> (bs, c, H, W) with H = isqrt(embed_dim),
    W = embed_dim // H (matches PyTorch's `-1`).
    """
    bs, c, embed_dim = x.shape
    h = math.isqrt(embed_dim)         # integer sqrt (avoids float-floor bug)
    w = embed_dim // h
    assert h * w == embed_dim, (
        f"embed_dim={embed_dim} not reshapable to ({h}, -1) as in PyTorch")

    total_rows = bs * c
    itemsize = jnp.dtype(x.dtype).itemsize
    vmem_bytes = _vmem_capacity_bytes()
    tile_rows = _pick_tile_rows(total_rows, embed_dim, itemsize, vmem_bytes)

    # Generous but bounded scoped-VMEM limit: tiles were budgeted against
    # half of physical VMEM, so 3/4 of physical always leaves headroom.
    vmem_limit = (vmem_bytes * 3) // 4

    # Free metadata reshape to a lane-dense 2D view: (bs*c, embed_dim).
    x_flat = x.reshape(total_rows, embed_dim)

    flat_out = pl.pallas_call(
        _copy_kernel,
        out_shape=jax.ShapeDtypeStruct((total_rows, embed_dim), x.dtype),
        grid_spec=pltpu.PrefetchScalarGridSpec(
            num_scalar_prefetch=0,
            grid=(pl.cdiv(total_rows, tile_rows),),
            in_specs=[
                # Last dim = embed_dim (full array dim) -> unmasked, lane-dense
                # loads/stores; row dim is a multiple of 8 or the full extent.
                pl.BlockSpec((tile_rows, embed_dim), lambda i: (i, 0)),
            ],
            out_specs=pl.BlockSpec((tile_rows, embed_dim), lambda i: (i, 0)),
        ),
        compiler_params=pltpu.CompilerParams(
            dimension_semantics=("parallel",),  # shard row tiles across TCs
            vmem_limit_bytes=vmem_limit,
        ),
    )(x_flat)

    # Free metadata reshapes: split embed_dim -> (H, W) and restore (bs, c).
    return flat_out.reshape(bs, c, h, w)


if __name__ == "__main__":
    # Token2Channel has no parameters; only the input needs constructing.
    key = jax.random.PRNGKey(0)
    bs, c, embed_dim = 2, 4, 64   # embed_dim is a perfect square: 64 -> 8x8
    x = jax.random.normal(key, (bs, c, embed_dim), dtype=jnp.float32)

    out = token2channel(x)
    out = jax.block_until_ready(out)

    # Reference: same semantics as torch.reshape on a contiguous tensor.
    ref = x.reshape(bs, c, math.isqrt(embed_dim), -1)
    assert out.shape == ref.shape, (out.shape, ref.shape)
    assert out.dtype == ref.dtype
    assert bool(jnp.all(out == ref))

    print("KERNEL_OK")
</pallas_src>

<mosaic_0001>
module attributes {stable_mosaic.version = 11 : i64} {
  func.func @_copy_kernel(%arg0: i32, %arg1: memref<8x64xf32, #tpu.memory_space<vmem>>, %arg2: memref<8x64xf32, #tpu.memory_space<vmem>>) attributes {dimension_semantics = [#tpu.dimension_semantics<parallel>], iteration_bounds = array<i64: 1>, scalar_prefetch = 0 : i64, scratch_operands = 0 : i64, tpu.core_type = #tpu.core_type<tc>, window_params = [{transform_indices = @transform_0, window_bounds = array<i64: 8, 64>}, {transform_indices = @transform_1, window_bounds = array<i64: 8, 64>}]} {
    %c0 = arith.constant 0 : index
    %c0_0 = arith.constant 0 : index
    %0 = vector.load %arg1[%c0, %c0_0] : memref<8x64xf32, #tpu.memory_space<vmem>>, vector<8x64xf32>
    %c0_1 = arith.constant 0 : index
    %c0_2 = arith.constant 0 : index
    %1 = vector.load %arg2[%c0_1, %c0_2] : memref<8x64xf32, #tpu.memory_space<vmem>>, vector<8x64xf32>
    tpu.vector_store %arg2[%c0_1, %c0_2], %0 {strides = array<i32>} : memref<8x64xf32, #tpu.memory_space<vmem>>, vector<8x64xf32>,
    return
  }
  func.func @transform_0(%arg0: i32) -> (i32, i32) {
    %c0_i32 = arith.constant 0 : i32
    %c0_i32_0 = arith.constant 0 : i32
    return %arg0, %c0_i32 : i32, i32
  }
  func.func @transform_1(%arg0: i32) -> (i32, i32) {
    %c0_i32 = arith.constant 0 : i32
    %c0_i32_0 = arith.constant 0 : i32
    return %arg0, %c0_i32 : i32, i32
  }
}

</mosaic_0001>

<llo_original>
// kernel: tpu_custom_call.1
$region0: #{tpu_custom_call.1}
  #allocation0 [shape = 'u32[]', space=smem, size = 0x4, offset = 0x4, fixed_abs, tag = 'smem constant byte address 0x4 - core index']
  #allocation1 [shape = 'u32[144,128]{1,0:T(1,128)}', space=vmem, size = 0x12000, scoped, tag = 'internal scratch']
  %s0 = inlined_call_operand.hbm [shape: f32[8,64], index: 0, kind: input, shape index: {}]
  %s1 = inlined_call_operand.hbm [shape: f32[8,64], index: 1, kind: output, shape index: {}]
  %s2 = sld [smem:[#allocation0]]
  $region18: #{tpu_custom_call.1} parent=0
    _
  %s4 = ssub.s32 1, %s2
  %s5 = scalar_select 0, %s4, %s2
  $region1: #{tpu_custom_call.1} parent=0
    #allocation2 [shape = 'u8[4096]{0}', space=vmem, size = 0x1000, scoped, tag = 'input window, operand 0, single buffered']
    #allocation3 [shape = 's32[1]{0}', space=sflag, size = 0x4, scoped, tag = 'scoped memory for tpu_custom_call.1']
    #allocation4 [shape = 's32[1]{0}', space=sflag, size = 0x4, scoped, tag = 'scoped memory for tpu_custom_call.1']
    #allocation5 [shape = 'u8[4096]{0}', space=vmem, size = 0x1000, scoped, tag = 'output window, operand 0, single buffered']
    %6 = vsyncpa [#allocation3], 0
    %7 = vsyncpa [#allocation4], 0
    // Predicated region
    $region2: #{tpu_custom_call.1} parent=1 // pred_check
      _
    $region3: #{tpu_custom_call.1} parent=1 // pred_check_branch
      %9 = sbr.rel (0) target = $region5
    $region4: #{tpu_custom_call.1} parent=1 // pred_region
      %s11 = ssub.s32 128, 128
      %12 = vsyncadd [#allocation3], %s11
      %s14 = sshll.u32 [#allocation2], 4
      %s15 = int_to_ptr.vmem [resolvable:$true] %s14
      %17 = dma.hbm_to_vmem [thread:$0]  %s0, 128, %s15, [#allocation3]
    $region5: #{tpu_custom_call.1} parent=1 // pred_fallthru
      _
    // Predicated region
    $region6: #{tpu_custom_call.1} parent=1 // pred_check
      _
    $region7: #{tpu_custom_call.1} parent=1 // pred_check_branch
      %19 = sbr.rel (0) target = $region9
    $region8: #{tpu_custom_call.1} parent=1 // pred_region
      %20 = dma.done [#allocation3], 128
    $region9: #{tpu_custom_call.1} parent=1 // pred_fallthru
      _
    %v21 = vld [vmem:[#allocation2] sm:$0xff]
    %vm22 = vcmask 523264
    %23 = vst.msk [vmem:[#allocation5] sm:$0xff] %vm22, %v21
    // Predicated region
    $region10: #{tpu_custom_call.1} parent=1 // pred_check
      _
    $region11: #{tpu_custom_call.1} parent=1 // pred_check_branch
      %25 = sbr.rel (0) target = $region13
    $region12: #{tpu_custom_call.1} parent=1 // pred_region
      %s27 = ssub.s32 128, 128
      %28 = vsyncadd [#allocation4], %s27
      %s30 = sshll.u32 [#allocation5], 4
      %s31 = int_to_ptr.vmem [resolvable:$true] %s30
      %33 = dma.vmem_to_hbm [thread:$0]  %s31, 128, %s1, [#allocation4]
    $region13: #{tpu_custom_call.1} parent=1 // pred_fallthru
      _
    // Predicated region
    $region14: #{tpu_custom_call.1} parent=1 // pred_check
      _
    $region15: #{tpu_custom_call.1} parent=1 // pred_check_branch
      %35 = sbr.rel (0) target = $region17
    $region16: #{tpu_custom_call.1} parent=1 // pred_region
      %36 = dma.done [#allocation4], 128
    $region17: #{tpu_custom_call.1} parent=1 // pred_fallthru
      _
    %37 = vsyncpa [#allocation3], 1
    %38 = vsyncpa [#allocation4], 1

</llo_original>
